<compile_context>
chip_gen: v6e
topology: v6e:2x2x1
jax: 0.10.0
libtpu: 0.0.40
codegen_flags: <defaults>
</compile_context>

<pallas_src>
import jax
import jax.numpy as jnp
from jax.experimental import pallas as pl
from jax.experimental.pallas import tpu as pltpu

IN_FEATURES = 784
OUT_FEATURES = 10
OUT_PAD = 128        # lane-dense output width (10 padded to 128)
TILE_B_MAX = 1024    # safe under v7x 32 MiB scoped-VMEM default w/ double buffering


def _round_up(n, m):
    return ((n + m - 1) // m) * m


def linear_kernel(x_ref, w_ref, b_ref, o_ref):
    # x_ref: [TILE_B, 784] bf16   w_ref: [784, 128] bf16 (resident)
    # b_ref: [1, 128]     f32     o_ref: [TILE_B, 128] f32 (lane-dense)
    acc = jnp.dot(x_ref[...], w_ref[...], preferred_element_type=jnp.float32)
    o_ref[...] = acc + b_ref[...]


def prepare_params(weight, bias):
    """One-time packing of PyTorch-layout params (weight [10,784], bias [10]).

    Transposes + zero-pads W to [784, 128] bf16 and bias to [1, 128] f32 so no
    transpose/pad op runs in the per-call hot path.
    """
    w_packed = jnp.zeros((IN_FEATURES, OUT_PAD), dtype=jnp.bfloat16)
    w_packed = w_packed.at[:, :OUT_FEATURES].set(weight.T.astype(jnp.bfloat16))
    b_packed = jnp.zeros((1, OUT_PAD), dtype=jnp.float32)
    b_packed = b_packed.at[:, :OUT_FEATURES].set(bias.astype(jnp.float32))
    return w_packed, b_packed


@jax.jit
def three_blue_forward(x, w_packed, b_packed):
    """x: [B, 1, 28, 28] (NCHW). w_packed: [784, 128] bf16. b_packed: [1, 128] f32."""
    B = x.shape[0]
    x_flat = x.reshape(B, IN_FEATURES).astype(jnp.bfloat16)   # nn.Flatten + bf16

    # Uniform batch tiles: pad B up so every block has identical shape.
    tile_b = min(TILE_B_MAX, _round_up(B, 8))
    B_pad = _round_up(B, tile_b)
    if B_pad != B:
        x_flat = jnp.pad(x_flat, ((0, B_pad - B), (0, 0)))
    num_tiles = B_pad // tile_b

    cost = pl.CostEstimate(
        flops=2 * B_pad * IN_FEATURES * OUT_PAD,
        transcendentals=0,
        bytes_accessed=(x_flat.size * 2            # bf16 activations in
                        + w_packed.size * 2        # bf16 weights in
                        + b_packed.size * 4        # f32 bias in
                        + B_pad * OUT_PAD * 4),    # f32 output out
    )

    out = pl.pallas_call(
        linear_kernel,
        out_shape=jax.ShapeDtypeStruct((B_pad, OUT_PAD), jnp.float32),
        grid_spec=pltpu.PrefetchScalarGridSpec(
            num_scalar_prefetch=0,
            grid=(num_tiles,),
            in_specs=[
                pl.BlockSpec((tile_b, IN_FEATURES), lambda i: (i, 0)),   # x tile
                pl.BlockSpec((IN_FEATURES, OUT_PAD), lambda i: (0, 0)),  # W resident
                pl.BlockSpec((1, OUT_PAD), lambda i: (0, 0)),            # b resident
            ],
            out_specs=pl.BlockSpec((tile_b, OUT_PAD), lambda i: (i, 0)),
        ),
        compiler_params=pltpu.CompilerParams(
            dimension_semantics=("parallel",),   # megacore sharding on v7x
        ),
        cost_estimate=cost,
    )(x_flat, w_packed, b_packed)

    return out[:B, :OUT_FEATURES]


if __name__ == "__main__":
    key = jax.random.PRNGKey(0)
    kx, kw, kb = jax.random.split(key, 3)

    B = 2
    x = jax.random.normal(kx, (B, 1, 28, 28), dtype=jnp.float32)    # MNIST-like NCHW
    # PyTorch Linear shapes: weight [10, 784], bias [10]
    weight = jax.random.normal(kw, (OUT_FEATURES, IN_FEATURES), dtype=jnp.float32) * 0.05
    bias = jax.random.normal(kb, (OUT_FEATURES,), dtype=jnp.float32) * 0.05

    w_packed, b_packed = prepare_params(weight, bias)

    out = three_blue_forward(x, w_packed, b_packed)
    out = jax.block_until_ready(out)

    # Reference with matching bf16 inputs / f32 accumulation (tight tolerance)
    x_flat = x.reshape(B, -1)
    ref_bf16 = jnp.dot(x_flat.astype(jnp.bfloat16), weight.T.astype(jnp.bfloat16),
                       preferred_element_type=jnp.float32) + bias
    # Full-f32 reference (loose tolerance: bf16 input rounding only)
    ref_f32 = x_flat @ weight.T + bias

    assert out.shape == (B, OUT_FEATURES)
    assert jnp.allclose(out, ref_bf16, atol=1e-3, rtol=1e-3)
    assert jnp.allclose(out, ref_f32, atol=5e-2, rtol=5e-2)

    print("KERNEL_OK")
</pallas_src>

<mosaic_0001>
module attributes {stable_mosaic.version = 11 : i64} {
  func.func @linear_kernel(%arg0: i32, %arg1: memref<8x784xbf16, #tpu.memory_space<vmem>>, %arg2: memref<784x128xbf16, #tpu.memory_space<vmem>>, %arg3: memref<1x128xf32, #tpu.memory_space<vmem>>, %arg4: memref<8x128xf32, #tpu.memory_space<vmem>>) attributes {dimension_semantics = [#tpu.dimension_semantics<parallel>], iteration_bounds = array<i64: 1>, scalar_prefetch = 0 : i64, scratch_operands = 0 : i64, tpu.core_type = #tpu.core_type<tc>, window_params = [{transform_indices = @transform_0, window_bounds = array<i64: 8, 784>}, {pipeline_mode = #tpu.pipeline_mode<synchronous>, transform_indices = @transform_1, window_bounds = array<i64: 784, 128>}, {pipeline_mode = #tpu.pipeline_mode<synchronous>, transform_indices = @transform_2, window_bounds = array<i64: 1, 128>}, {transform_indices = @transform_3, window_bounds = array<i64: 8, 128>}]} {
    %c0 = arith.constant 0 : index
    %c0_0 = arith.constant 0 : index
    %0 = vector.load %arg1[%c0, %c0_0] : memref<8x784xbf16, #tpu.memory_space<vmem>>, vector<8x784xbf16>
    %c0_1 = arith.constant 0 : index
    %c0_2 = arith.constant 0 : index
    %1 = vector.load %arg2[%c0_1, %c0_2] : memref<784x128xbf16, #tpu.memory_space<vmem>>, vector<784x128xbf16>
    %cst = arith.constant dense<0.000000e+00> : vector<8x128xf32>
    %2 = tpu.matmul %0, %1, %cst {dimension_numbers = #tpu.dot_dimension_numbers<[1], [0], [0], [1], [0, 0, 1, 1], [], []>} : vector<8x784xbf16>, vector<784x128xbf16>, vector<8x128xf32> -> vector<8x128xf32>
    %c0_3 = arith.constant 0 : index
    %c0_4 = arith.constant 0 : index
    %3 = vector.load %arg3[%c0_3, %c0_4] : memref<1x128xf32, #tpu.memory_space<vmem>>, vector<1x128xf32>
    %4 = vector.broadcast %3 : vector<1x128xf32> to vector<8x128xf32>
    %5 = arith.addf %2, %4 : vector<8x128xf32>
    %c0_5 = arith.constant 0 : index
    %c0_6 = arith.constant 0 : index
    %6 = vector.load %arg4[%c0_5, %c0_6] : memref<8x128xf32, #tpu.memory_space<vmem>>, vector<8x128xf32>
    tpu.vector_store %arg4[%c0_5, %c0_6], %5 {strides = array<i32>} : memref<8x128xf32, #tpu.memory_space<vmem>>, vector<8x128xf32>,
    return
  }
  func.func @transform_0(%arg0: i32) -> (i32, i32) {
    %c0_i32 = arith.constant 0 : i32
    %c0_i32_0 = arith.constant 0 : i32
    return %arg0, %c0_i32 : i32, i32
  }
  func.func @transform_1(%arg0: i32) -> (i32, i32) {
    %c0_i32 = arith.constant 0 : i32
    %c0_i32_0 = arith.constant 0 : i32
    %c0_i32_1 = arith.constant 0 : i32
    return %c0_i32, %c0_i32_0 : i32, i32
  }
  func.func @transform_2(%arg0: i32) -> (i32, i32) {
    %c0_i32 = arith.constant 0 : i32
    %c0_i32_0 = arith.constant 0 : i32
    %c0_i32_1 = arith.constant 0 : i32
    return %c0_i32, %c0_i32_0 : i32, i32
  }
  func.func @transform_3(%arg0: i32) -> (i32, i32) {
    %c0_i32 = arith.constant 0 : i32
    %c0_i32_0 = arith.constant 0 : i32
    return %arg0, %c0_i32 : i32, i32
  }
}

</mosaic_0001>

<llo_original>
// kernel: three_blue_forward.1
$region0: #{three_blue_forward.1}
  #allocation0 [shape = 'u32[]', space=smem, size = 0x4, offset = 0x4, fixed_abs, tag = 'smem constant byte address 0x4 - core index']
  #allocation1 [shape = 'u32[144,128]{1,0:T(1,128)}', space=vmem, size = 0x12000, scoped, tag = 'internal scratch']
  %s0 = inlined_call_operand.vmem [shape: bf16[8,784], index: 0, kind: input, shape index: {}]
  %s1 = inlined_call_operand.hbm [shape: bf16[784,128], index: 1, kind: input, shape index: {}]
  %s2 = inlined_call_operand.vmem [shape: f32[1,128], index: 2, kind: input, shape index: {}]
  %s3 = inlined_call_operand.vmem [shape: f32[8,128], index: 3, kind: output, shape index: {}]
  %s4 = sld [smem:[#allocation0]]
  $region26: #{three_blue_forward.1} parent=0
    _
  %s6 = ssub.s32 1, %s4
  %s7 = scalar_select 0, %s6, %s4
  $region1: #{three_blue_forward.1} parent=0
    #allocation2 [shape = 'u8[200704]{0}', space=vmem, size = 0x31000, scoped, tag = 'input window, operand 1, single buffered']
    #allocation3 [shape = 's32[1]{0}', space=sflag, size = 0x4, scoped, tag = 'scoped memory for three_blue_forward.1']
    %8 = vsyncpa [#allocation3], 0
    // Predicated region
    $region2: #{three_blue_forward.1} parent=1 // pred_check
      _
    $region3: #{three_blue_forward.1} parent=1 // pred_check_branch
      %10 = sbr.rel (0) target = $region5
    $region4: #{three_blue_forward.1} parent=1 // pred_region
      _
    $region5: #{three_blue_forward.1} parent=1 // pred_fallthru
      _
    // Predicated region
    $region6: #{three_blue_forward.1} parent=1 // pred_check
      _
    $region7: #{three_blue_forward.1} parent=1 // pred_check_branch
      %12 = sbr.rel (0) target = $region9
    $region8: #{three_blue_forward.1} parent=1 // pred_region
      %s14 = ssub.s32 6272, 6272
      %15 = vsyncadd [#allocation3], %s14
      %s16 = sshll.u32 [#allocation2], 4
      %s17 = int_to_ptr.vmem [resolvable:$true] %s16
      %22 = dma.hbm_to_vmem [thread:$0]  %s1, 6272, %s17, [#allocation3], 64, 64, 4
    $region9: #{three_blue_forward.1} parent=1 // pred_fallthru
      _
    // Predicated region
    $region10: #{three_blue_forward.1} parent=1 // pred_check
      _
    $region11: #{three_blue_forward.1} parent=1 // pred_check_branch
      %24 = sbr.rel (0) target = $region13
    $region12: #{three_blue_forward.1} parent=1 // pred_region
      _
    $region13: #{three_blue_forward.1} parent=1 // pred_fallthru
      _
    // Predicated region
    $region14: #{three_blue_forward.1} parent=1 // pred_check
      _
    $region15: #{three_blue_forward.1} parent=1 // pred_check_branch
      %26 = sbr.rel (0) target = $region17
    $region16: #{three_blue_forward.1} parent=1 // pred_region
      %27 = dma.done [#allocation3], 6272
    $region17: #{three_blue_forward.1} parent=1 // pred_fallthru
      _
    %v29 = vld [vmem:[%s0] sm:$0xff]
    %v30 = vld [vmem:[%s0 + $0x8] sm:$0xff]
    %v31 = vld [vmem:[%s0 + $0x10] sm:$0xff]
    %v32 = vld [vmem:[%s0 + $0x18] sm:$0xf]
    %v33 = vld [vmem:[#allocation2] sm:$0xf]
    %v34 = vld [vmem:[#allocation2 + $0x4] sm:$0xf]
    %v35 = vld [vmem:[#allocation2 + $0x8] sm:$0xf]
    %v36 = vld [vmem:[#allocation2 + $0xc] sm:$0xf]
    %v37 = vld [vmem:[#allocation2 + $0x10] sm:$0xf]
    %v38 = vld [vmem:[#allocation2 + $0x14] sm:$0xf]
    %v39 = vld [vmem:[#allocation2 + $0x18] sm:$0xf]
    %v40 = vld [vmem:[#allocation2 + $0x1c] sm:$0xf]
    %v41 = vld [vmem:[#allocation2 + $0x20] sm:$0xf]
    %v42 = vld [vmem:[#allocation2 + $0x24] sm:$0xf]
    %v43 = vld [vmem:[#allocation2 + $0x28] sm:$0xf]
    %v44 = vld [vmem:[#allocation2 + $0x2c] sm:$0xf]
    %v45 = vld [vmem:[#allocation2 + $0x30] sm:$0xf]
    %v46 = vld [vmem:[#allocation2 + $0x34] sm:$0xf]
    %v47 = vld [vmem:[#allocation2 + $0x38] sm:$0xf]
    %v48 = vld [vmem:[#allocation2 + $0x3c] sm:$0xf]
    %v49 = vld [vmem:[#allocation2 + $0x40] sm:$0xf]
    %v50 = vld [vmem:[#allocation2 + $0x44] sm:$0xf]
    %v51 = vld [vmem:[#allocation2 + $0x48] sm:$0xf]
    %v52 = vld [vmem:[#allocation2 + $0x4c] sm:$0xf]
    %v53 = vld [vmem:[#allocation2 + $0x50] sm:$0xf]
    %v54 = vld [vmem:[#allocation2 + $0x54] sm:$0xf]
    %v55 = vld [vmem:[#allocation2 + $0x58] sm:$0xf]
    %v56 = vld [vmem:[#allocation2 + $0x5c] sm:$0xf]
    %v57 = vld [vmem:[#allocation2 + $0x60] sm:$0xf]
    %v58 = vld [vmem:[#allocation2 + $0x64] sm:$0xf]
    %v59 = vld [vmem:[#allocation2 + $0x68] sm:$0xf]
    %v60 = vld [vmem:[#allocation2 + $0x6c] sm:$0xf]
    %v61 = vld [vmem:[#allocation2 + $0x70] sm:$0xf]
    %v62 = vld [vmem:[#allocation2 + $0x74] sm:$0xf]
    %v63 = vld [vmem:[#allocation2 + $0x78] sm:$0xf]
    %v64 = vld [vmem:[#allocation2 + $0x7c] sm:$0xf]
    %v65 = vld [vmem:[#allocation2 + $0x80] sm:$0xf]
    %v66 = vld [vmem:[#allocation2 + $0x84] sm:$0xf]
    %v67 = vld [vmem:[#allocation2 + $0x88] sm:$0xf]
    %v68 = vld [vmem:[#allocation2 + $0x8c] sm:$0xf]
    %v69 = vld [vmem:[#allocation2 + $0x90] sm:$0xf]
    %v70 = vld [vmem:[#allocation2 + $0x94] sm:$0xf]
    %v71 = vld [vmem:[#allocation2 + $0x98] sm:$0xf]
    %v72 = vld [vmem:[#allocation2 + $0x9c] sm:$0xf]
    %v73 = vld [vmem:[#allocation2 + $0xa0] sm:$0xf]
    %v74 = vld [vmem:[#allocation2 + $0xa4] sm:$0xf]
    %v75 = vld [vmem:[#allocation2 + $0xa8] sm:$0xf]
    %v76 = vld [vmem:[#allocation2 + $0xac] sm:$0xf]
    %v77 = vld [vmem:[#allocation2 + $0xb0] sm:$0xf]
    %v78 = vld [vmem:[#allocation2 + $0xb4] sm:$0xf]
    %v79 = vld [vmem:[#allocation2 + $0xb8] sm:$0xf]
    %v80 = vld [vmem:[#allocation2 + $0xbc] sm:$0xf]
    %v81 = vld [vmem:[#allocation2 + $0xc0] sm:$0xf]
    %v82 = vld [vmem:[#allocation2 + $0xc4] sm:$0xf]
    %v83 = vld [vmem:[#allocation2 + $0xc8] sm:$0xf]
    %v84 = vld [vmem:[#allocation2 + $0xcc] sm:$0xf]
    %v85 = vld [vmem:[#allocation2 + $0xd0] sm:$0xf]
    %v86 = vld [vmem:[#allocation2 + $0xd4] sm:$0xf]
    %v87 = vld [vmem:[#allocation2 + $0xd8] sm:$0xf]
    %v88 = vld [vmem:[#allocation2 + $0xdc] sm:$0xf]
    %v89 = vld [vmem:[#allocation2 + $0xe0] sm:$0xf]
    %v90 = vld [vmem:[#allocation2 + $0xe4] sm:$0xf]
    %v91 = vld [vmem:[#allocation2 + $0xe8] sm:$0xf]
    %v92 = vld [vmem:[#allocation2 + $0xec] sm:$0xf]
    %v93 = vld [vmem:[#allocation2 + $0xf0] sm:$0xf]
    %v94 = vld [vmem:[#allocation2 + $0xf4] sm:$0xf]
    %v95 = vld [vmem:[#allocation2 + $0xf8] sm:$0xf]
    %v96 = vld [vmem:[#allocation2 + $0xfc] sm:$0xf]
    %v97 = vld [vmem:[#allocation2 + $0x100] sm:$0xf]
    %v98 = vld [vmem:[#allocation2 + $0x104] sm:$0xf]
    %v99 = vld [vmem:[#allocation2 + $0x108] sm:$0xf]
    %v100 = vld [vmem:[#allocation2 + $0x10c] sm:$0xf]
    %v101 = vld [vmem:[#allocation2 + $0x110] sm:$0xf]
    %v102 = vld [vmem:[#allocation2 + $0x114] sm:$0xf]
    %v103 = vld [vmem:[#allocation2 + $0x118] sm:$0xf]
    %v104 = vld [vmem:[#allocation2 + $0x11c] sm:$0xf]
    %v105 = vld [vmem:[#allocation2 + $0x120] sm:$0xf]
    %v106 = vld [vmem:[#allocation2 + $0x124] sm:$0xf]
    %v107 = vld [vmem:[#allocation2 + $0x128] sm:$0xf]
    %v108 = vld [vmem:[#allocation2 + $0x12c] sm:$0xf]
    %v109 = vld [vmem:[#allocation2 + $0x130] sm:$0xf]
    %v110 = vld [vmem:[#allocation2 + $0x134] sm:$0xf]
    %v111 = vld [vmem:[#allocation2 + $0x138] sm:$0xf]
    %v112 = vld [vmem:[#allocation2 + $0x13c] sm:$0xf]
    %v113 = vld [vmem:[#allocation2 + $0x140] sm:$0xf]
    %v114 = vld [vmem:[#allocation2 + $0x144] sm:$0xf]
    %v115 = vld [vmem:[#allocation2 + $0x148] sm:$0xf]
    %v116 = vld [vmem:[#allocation2 + $0x14c] sm:$0xf]
    %v117 = vld [vmem:[#allocation2 + $0x150] sm:$0xf]
    %v118 = vld [vmem:[#allocation2 + $0x154] sm:$0xf]
    %v119 = vld [vmem:[#allocation2 + $0x158] sm:$0xf]
    %v120 = vld [vmem:[#allocation2 + $0x15c] sm:$0xf]
    %v121 = vld [vmem:[#allocation2 + $0x160] sm:$0xf]
    %v122 = vld [vmem:[#allocation2 + $0x164] sm:$0xf]
    %v123 = vld [vmem:[#allocation2 + $0x168] sm:$0xf]
    %v124 = vld [vmem:[#allocation2 + $0x16c] sm:$0xf]
    %v125 = vld [vmem:[#allocation2 + $0x170] sm:$0xf]
    %v126 = vld [vmem:[#allocation2 + $0x174] sm:$0xf]
    %v127 = vld [vmem:[#allocation2 + $0x178] sm:$0xf]
    %v128 = vld [vmem:[#allocation2 + $0x17c] sm:$0xf]
    %v129 = vld [vmem:[#allocation2 + $0x180] sm:$0xf]
    %v130 = vld [vmem:[#allocation2 + $0x184] sm:$0xf]
    %v131 = vld [vmem:[%s2] sm:$0x1]
    %v133 = vlaneseq
    %v134 = vshrl.u32 %v133, 7
    %v135 = vsub.s32 0, %v134
    %v136 = vrot.slane %v131, %v135
    %v142 = vunpack.c.l.b16 %v29
    %v143 = vunpack.c.h.b16 %v29
    %v144 = vunpack.c.l.b16 %v30
    %v145 = vunpack.c.h.b16 %v30
    %v146 = vunpack.c.l.b16 %v31
    %v147 = vunpack.c.h.b16 %v31
    %v148 = vunpack.c.l.b16 %v32
    %v149 = vpack.c.b16 %v142, %v142
    %v150 = vpack.c.b16 %v143, %v143
    %v151 = vpack.c.b16 %v144, %v144
    %v152 = vpack.c.b16 %v145, %v145
    %v153 = vpack.c.b16 %v146, %v146
    %v154 = vpack.c.b16 %v147, %v147
    %v155 = vpack.c.b16 %v148, %v148
    %v260 = vunpack.c.l.b16 %v33
    %v261 = vunpack.c.l.b16 %v34
    %v262 = vunpack.c.l.b16 %v35
    %v263 = vunpack.c.l.b16 %v36
    %v264 = vunpack.c.l.b16 %v37
    %v265 = vunpack.c.l.b16 %v38
    %v266 = vunpack.c.l.b16 %v39
    %v267 = vunpack.c.l.b16 %v40
    %v268 = vunpack.c.l.b16 %v41
    %v269 = vunpack.c.l.b16 %v42
    %v270 = vunpack.c.l.b16 %v43
    %v271 = vunpack.c.l.b16 %v44
    %v272 = vunpack.c.l.b16 %v45
    %v273 = vunpack.c.l.b16 %v46
    %v274 = vunpack.c.l.b16 %v47
    %v275 = vunpack.c.l.b16 %v48
    %v276 = vunpack.c.l.b16 %v49
    %v277 = vunpack.c.l.b16 %v50
    %v278 = vunpack.c.l.b16 %v51
    %v279 = vunpack.c.l.b16 %v52
    %v280 = vunpack.c.l.b16 %v53
    %v281 = vunpack.c.l.b16 %v54
    %v282 = vunpack.c.l.b16 %v55
    %v283 = vunpack.c.l.b16 %v56
    %v284 = vunpack.c.l.b16 %v57
    %v285 = vunpack.c.l.b16 %v58
    %v286 = vunpack.c.l.b16 %v59
    %v287 = vunpack.c.l.b16 %v60
    %v288 = vunpack.c.l.b16 %v61
    %v289 = vunpack.c.l.b16 %v62
    %v290 = vunpack.c.l.b16 %v63
    %v291 = vunpack.c.l.b16 %v64
    %v292 = vunpack.c.l.b16 %v65
    %v293 = vunpack.c.l.b16 %v66
    %v294 = vunpack.c.l.b16 %v67
    %v295 = vunpack.c.l.b16 %v68
    %v296 = vunpack.c.l.b16 %v69
    %v297 = vunpack.c.l.b16 %v70
    %v298 = vunpack.c.l.b16 %v71
    %v299 = vunpack.c.l.b16 %v72
    %v300 = vunpack.c.l.b16 %v73
    %v301 = vunpack.c.l.b16 %v74
    %v302 = vunpack.c.l.b16 %v75
    %v303 = vunpack.c.l.b16 %v76
    %v304 = vunpack.c.l.b16 %v77
    %v305 = vunpack.c.l.b16 %v78
    %v306 = vunpack.c.l.b16 %v79
    %v307 = vunpack.c.l.b16 %v80
    %v308 = vunpack.c.l.b16 %v81
    %v309 = vunpack.c.l.b16 %v82
    %v310 = vunpack.c.l.b16 %v83
    %v311 = vunpack.c.l.b16 %v84
    %v312 = vunpack.c.l.b16 %v85
    %v313 = vunpack.c.l.b16 %v86
    %v314 = vunpack.c.l.b16 %v87
    %v315 = vunpack.c.l.b16 %v88
    %v316 = vunpack.c.l.b16 %v89
    %v317 = vunpack.c.l.b16 %v90
    %v318 = vunpack.c.l.b16 %v91
    %v319 = vunpack.c.l.b16 %v92
    %v320 = vunpack.c.l.b16 %v93
    %v321 = vunpack.c.l.b16 %v94
    %v322 = vunpack.c.l.b16 %v95
    %v323 = vunpack.c.l.b16 %v96
    %v324 = vunpack.c.l.b16 %v97
    %v325 = vunpack.c.l.b16 %v98
    %v326 = vunpack.c.l.b16 %v99
    %v327 = vunpack.c.l.b16 %v100
    %v328 = vunpack.c.l.b16 %v101
    %v329 = vunpack.c.l.b16 %v102
    %v330 = vunpack.c.l.b16 %v103
    %v331 = vunpack.c.l.b16 %v104
    %v332 = vunpack.c.l.b16 %v105
    %v333 = vunpack.c.l.b16 %v106
    %v334 = vunpack.c.l.b16 %v107
    %v335 = vunpack.c.l.b16 %v108
    %v336 = vunpack.c.l.b16 %v109
    %v337 = vunpack.c.l.b16 %v110
    %v338 = vunpack.c.l.b16 %v111
    %v339 = vunpack.c.l.b16 %v112
    %v340 = vunpack.c.l.b16 %v113
    %v341 = vunpack.c.l.b16 %v114
    %v342 = vunpack.c.l.b16 %v115
    %v343 = vunpack.c.l.b16 %v116
    %v344 = vunpack.c.l.b16 %v117
    %v345 = vunpack.c.l.b16 %v118
    %v346 = vunpack.c.l.b16 %v119
    %v347 = vunpack.c.l.b16 %v120
    %v348 = vunpack.c.l.b16 %v121
    %v349 = vunpack.c.l.b16 %v122
    %v350 = vunpack.c.l.b16 %v123
    %v351 = vunpack.c.l.b16 %v124
    %v352 = vunpack.c.l.b16 %v125
    %v353 = vunpack.c.l.b16 %v126
    %v354 = vunpack.c.l.b16 %v127
    %v355 = vunpack.c.l.b16 %v128
    %v356 = vunpack.c.l.b16 %v129
    %v357 = vunpack.c.l.b16 %v130
    %v358 = vpack.c.b16 %v261, %v260
    %v359 = vpack.c.b16 %v263, %v262
    %v360 = vpack.c.b16 %v265, %v264
    %v361 = vpack.c.b16 %v267, %v266
    %v362 = vpack.c.b16 %v269, %v268
    %v363 = vpack.c.b16 %v271, %v270
    %v364 = vpack.c.b16 %v273, %v272
    %v365 = vpack.c.b16 %v275, %v274
    %v366 = vpack.c.b16 %v277, %v276
    %v367 = vpack.c.b16 %v279, %v278
    %v368 = vpack.c.b16 %v281, %v280
    %v369 = vpack.c.b16 %v283, %v282
    %v370 = vpack.c.b16 %v285, %v284
    %v371 = vpack.c.b16 %v287, %v286
    %v372 = vpack.c.b16 %v289, %v288
    %v373 = vpack.c.b16 %v291, %v290
    %v374 = vpack.c.b16 %v293, %v292
    %v375 = vpack.c.b16 %v295, %v294
    %v376 = vpack.c.b16 %v297, %v296
    %v377 = vpack.c.b16 %v299, %v298
    %v378 = vpack.c.b16 %v301, %v300
    %v379 = vpack.c.b16 %v303, %v302
    %v380 = vpack.c.b16 %v305, %v304
    %v381 = vpack.c.b16 %v307, %v306
    %v382 = vpack.c.b16 %v309, %v308
    %v383 = vpack.c.b16 %v311, %v310
    %v384 = vpack.c.b16 %v313, %v312
    %v385 = vpack.c.b16 %v315, %v314
    %v386 = vpack.c.b16 %v317, %v316
    %v387 = vpack.c.b16 %v319, %v318
    %v388 = vpack.c.b16 %v321, %v320
    %v389 = vpack.c.b16 %v323, %v322
    %v390 = vpack.c.b16 %v325, %v324
    %v391 = vpack.c.b16 %v327, %v326
    %v392 = vpack.c.b16 %v329, %v328
    %v393 = vpack.c.b16 %v331, %v330
    %v394 = vpack.c.b16 %v333, %v332
    %v395 = vpack.c.b16 %v335, %v334
    %v396 = vpack.c.b16 %v337, %v336
    %v397 = vpack.c.b16 %v339, %v338
    %v398 = vpack.c.b16 %v341, %v340
    %v399 = vpack.c.b16 %v343, %v342
    %v400 = vpack.c.b16 %v345, %v344
    %v401 = vpack.c.b16 %v347, %v346
    %v402 = vpack.c.b16 %v349, %v348
    %v403 = vpack.c.b16 %v351, %v350
    %v404 = vpack.c.b16 %v353, %v352
    %v405 = vpack.c.b16 %v355, %v354
    %v406 = vpack.c.b16 %v357, %v356
    %vm456 = vcmask 130048
    %v458 = vsel %vm456, %v155, 0
    %460 = vmatprep.subr.bf16.mxu0 0
    %461 = vmatpush1.bf16.msra.mxu0 %v365
    %462 = vmatprep.subr.bf16.mxu0 0
    %463 = vmatpush1.bf16.msra.mxu0 %v364
    %464 = vmatprep.subr.bf16.mxu0 0
    %465 = vmatpush1.bf16.msra.mxu0 %v363
    %466 = vmatprep.subr.bf16.mxu0 0
    %467 = vmatpush1.bf16.msra.mxu0 %v362
    %468 = vmatprep.subr.bf16.mxu0 0
    %469 = vmatpush1.bf16.msra.mxu0 %v361
    %470 = vmatprep.subr.bf16.mxu0 0
    %471 = vmatpush1.bf16.msra.mxu0 %v360
    %472 = vmatprep.subr.bf16.mxu0 0
    %473 = vmatpush1.bf16.msra.mxu0 %v359
    %474 = vmatprep.subr.bf16.mxu0 0
    %475 = vmatpush1.bf16.msra.mxu0 %v358
    %476 = vmatprep.subr.bf16.mxu0 0
    %477 = vmatpush2.bf16.msra.mxu0 %v373
    %478 = vmatprep.subr.bf16.mxu0 0
    %479 = vmatpush2.bf16.msra.mxu0 %v372
    %480 = vmatprep.subr.bf16.mxu0 0
    %481 = vmatpush2.bf16.msra.mxu0 %v371
    %482 = vmatprep.subr.bf16.mxu0 0
    %483 = vmatpush2.bf16.msra.mxu0 %v370
    %484 = vmatprep.subr.bf16.mxu0 0
    %485 = vmatpush2.bf16.msra.mxu0 %v369
    %486 = vmatprep.subr.bf16.mxu0 0
    %487 = vmatpush2.bf16.msra.mxu0 %v368
    %488 = vmatprep.subr.bf16.mxu0 0
    %489 = vmatpush2.bf16.msra.mxu0 %v367
    %490 = vmatprep.subr.bf16.mxu0 0
    %491 = vmatpush2.bf16.msra.mxu0 %v366
    %492 = vmatprep.mubr.bf16.mxu0 %v150
    %493 = vmatmul.mubr.bf16.gmra.mxu0 %v149
    %v494 = vpop.f32.mrf.mxu0
    %v495 = vadd.f32 %v136, %v494
    %v496 = vpop.f32.mrf.mxu0
    %v497 = vpop.f32.mrf.mxu0
    %v498 = vpop.f32.mrf.mxu0
    %499 = vdwg.mxu0
    %500 = vmatprep.subr.bf16.mxu0 0
    %501 = vmatpush1.bf16.msra.mxu0 %v381
    %502 = vmatprep.subr.bf16.mxu0 0
    %503 = vmatpush1.bf16.msra.mxu0 %v380
    %504 = vmatprep.subr.bf16.mxu0 0
    %505 = vmatpush1.bf16.msra.mxu0 %v379
    %506 = vmatprep.subr.bf16.mxu0 0
    %507 = vmatpush1.bf16.msra.mxu0 %v378
    %508 = vmatprep.subr.bf16.mxu0 0
    %509 = vmatpush1.bf16.msra.mxu0 %v377
    %510 = vmatprep.subr.bf16.mxu0 0
    %511 = vmatpush1.bf16.msra.mxu0 %v376
    %512 = vmatprep.subr.bf16.mxu0 0
    %513 = vmatpush1.bf16.msra.mxu0 %v375
    %514 = vmatprep.subr.bf16.mxu0 0
    %515 = vmatpush1.bf16.msra.mxu0 %v374
    %516 = vmatprep.subr.bf16.mxu0 0
    %517 = vmatpush2.bf16.msra.mxu0 %v389
    %518 = vmatprep.subr.bf16.mxu0 0
    %519 = vmatpush2.bf16.msra.mxu0 %v388
    %520 = vmatprep.subr.bf16.mxu0 0
    %521 = vmatpush2.bf16.msra.mxu0 %v387
    %522 = vmatprep.subr.bf16.mxu0 0
    %523 = vmatpush2.bf16.msra.mxu0 %v386
    %524 = vmatprep.subr.bf16.mxu0 0
    %525 = vmatpush2.bf16.msra.mxu0 %v385
    %526 = vmatprep.subr.bf16.mxu0 0
    %527 = vmatpush2.bf16.msra.mxu0 %v384
    %528 = vmatprep.subr.bf16.mxu0 0
    %529 = vmatpush2.bf16.msra.mxu0 %v383
    %530 = vmatprep.subr.bf16.mxu0 0
    %531 = vmatpush2.bf16.msra.mxu0 %v382
    %532 = vmatprep.mubr.bf16.mxu0 %v152
    %533 = vmatmul.mubr.bf16.gmra.mxu0 %v151
    %v534 = vpop.f32.mrf.mxu0
    %v535 = vadd.f32 %v495, %v534
    %v536 = vpop.f32.mrf.mxu0
    %v537 = vpop.f32.mrf.mxu0
    %v538 = vpop.f32.mrf.mxu0
    %539 = vdwg.mxu0
    %540 = vmatprep.subr.bf16.mxu0 0
    %541 = vmatpush1.bf16.msra.mxu0 %v397
    %542 = vmatprep.subr.bf16.mxu0 0
    %543 = vmatpush1.bf16.msra.mxu0 %v396
    %544 = vmatprep.subr.bf16.mxu0 0
    %545 = vmatpush1.bf16.msra.mxu0 %v395
    %546 = vmatprep.subr.bf16.mxu0 0
    %547 = vmatpush1.bf16.msra.mxu0 %v394
    %548 = vmatprep.subr.bf16.mxu0 0
    %549 = vmatpush1.bf16.msra.mxu0 %v393
    %550 = vmatprep.subr.bf16.mxu0 0
    %551 = vmatpush1.bf16.msra.mxu0 %v392
    %552 = vmatprep.subr.bf16.mxu0 0
    %553 = vmatpush1.bf16.msra.mxu0 %v391
    %554 = vmatprep.subr.bf16.mxu0 0
    %555 = vmatpush1.bf16.msra.mxu0 %v390
    %556 = vmatprep.subr.bf16.mxu0 0
    %557 = vmatpush2.bf16.msra.mxu0 %v405
    %558 = vmatprep.subr.bf16.mxu0 0
    %559 = vmatpush2.bf16.msra.mxu0 %v404
    %560 = vmatprep.subr.bf16.mxu0 0
    %561 = vmatpush2.bf16.msra.mxu0 %v403
    %562 = vmatprep.subr.bf16.mxu0 0
    %563 = vmatpush2.bf16.msra.mxu0 %v402
    %564 = vmatprep.subr.bf16.mxu0 0
    %565 = vmatpush2.bf16.msra.mxu0 %v401
    %566 = vmatprep.subr.bf16.mxu0 0
    %567 = vmatpush2.bf16.msra.mxu0 %v400
    %568 = vmatprep.subr.bf16.mxu0 0
    %569 = vmatpush2.bf16.msra.mxu0 %v399
    %570 = vmatprep.subr.bf16.mxu0 0
    %571 = vmatpush2.bf16.msra.mxu0 %v398
    %572 = vmatprep.mubr.bf16.mxu0 %v154
    %573 = vmatmul.mubr.bf16.gmra.mxu0 %v153
    %v574 = vpop.f32.mrf.mxu0
    %v575 = vadd.f32 %v535, %v574
    %v576 = vpop.f32.mrf.mxu0
    %v577 = vpop.f32.mrf.mxu0
    %v578 = vpop.f32.mrf.mxu0
    %579 = vdwg.mxu0
    %580 = vmatprep.subr.bf16.mxu0 0
    %581 = vmatpush1.bf16.msra.mxu0 0
    %582 = vmatprep.subr.bf16.mxu0 0
    %583 = vmatpush1.bf16.msra.mxu0 0
    %584 = vmatprep.subr.bf16.mxu0 0
    %585 = vmatpush1.bf16.msra.mxu0 0
    %586 = vmatprep.subr.bf16.mxu0 0
    %587 = vmatpush1.bf16.msra.mxu0 0
    %588 = vmatprep.subr.bf16.mxu0 0
    %589 = vmatpush1.bf16.msra.mxu0 0
    %590 = vmatprep.subr.bf16.mxu0 0
    %591 = vmatpush1.bf16.msra.mxu0 0
    %592 = vmatprep.subr.bf16.mxu0 0
    %593 = vmatpush1.bf16.msra.mxu0 0
    %594 = vmatprep.subr.bf16.mxu0 0
    %595 = vmatpush1.bf16.msra.mxu0 %v406
    %596 = vmatprep.subr.bf16.mxu0 0
    %597 = vmatpush2.bf16.msra.mxu0 0
    %598 = vmatprep.subr.bf16.mxu0 0
    %599 = vmatpush2.bf16.msra.mxu0 0
    %600 = vmatprep.subr.bf16.mxu0 0
    %601 = vmatpush2.bf16.msra.mxu0 0
    %602 = vmatprep.subr.bf16.mxu0 0
    %603 = vmatpush2.bf16.msra.mxu0 0
    %604 = vmatprep.subr.bf16.mxu0 0
    %605 = vmatpush2.bf16.msra.mxu0 0
    %606 = vmatprep.subr.bf16.mxu0 0
    %607 = vmatpush2.bf16.msra.mxu0 0
    %608 = vmatprep.subr.bf16.mxu0 0
    %609 = vmatpush2.bf16.msra.mxu0 0
    %610 = vmatprep.subr.bf16.mxu0 0
    %611 = vmatpush2.bf16.msra.mxu0 0
    %612 = vmatprep.mubr.bf16.mxu0 0
    %613 = vmatmul.mubr.bf16.gmra.mxu0 %v458
    %v614 = vpop.f32.mrf.mxu0
    %v615 = vadd.f32 %v575, %v614
    %v616 = vpop.f32.mrf.mxu0
    %v617 = vpop.f32.mrf.mxu0
    %v618 = vpop.f32.mrf.mxu0
    %619 = vdwg.mxu0
    %620 = vst [vmem:[%s3] sm:$0xff] %v615
    // Predicated region
    $region18: #{three_blue_forward.1} parent=1 // pred_check
      _
    $region19: #{three_blue_forward.1} parent=1 // pred_check_branch
      %622 = sbr.rel (0) target = $region21
    $region20: #{three_blue_forward.1} parent=1 // pred_region
      _
    $region21: #{three_blue_forward.1} parent=1 // pred_fallthru
      _
    // Predicated region
    $region22: #{three_blue_forward.1} parent=1 // pred_check
      _
    $region23: #{three_blue_forward.1} parent=1 // pred_check_branch
      %624 = sbr.rel (0) target = $region25
    $region24: #{three_blue_forward.1} parent=1 // pred_region
      _
    $region25: #{three_blue_forward.1} parent=1 // pred_fallthru
      _
    %625 = vsyncpa [#allocation3], 1

</llo_original>
